<compile_context>
chip_gen: v7x
topology: tpu7x:2x2x1
jax: 0.10.0
libtpu: 0.0.40
codegen_flags: <defaults>
</compile_context>

<pallas_src>
import jax
import jax.numpy as jnp
from jax.experimental import pallas as pl
from jax.experimental.pallas import tpu as pltpu


def _policy_kernel(x_ref, w1_ref, w2_ref, packed_ref, o_ref):
    # packed_ref rows: 0 -> b1 (H), 1 -> b2 (H//2), 2 -> w3 column (H//2), 3 -> b3 (1)
    h_half = w2_ref.shape[1]

    x = x_ref[...]            # (TB, 4)  f32
    w1 = w1_ref[...]          # (4, H)   f32
    b1 = packed_ref[0:1, :]   # (1, H)

    # ---- Layer 1: Linear(4 -> H) + ReLU as 4 unrolled VPU FMAs (no MXU) ----
    acc = b1 + x[:, 0:1] * w1[0:1, :]
    for k in range(1, 4):
        acc = acc + x[:, k:k + 1] * w1[k:k + 1, :]
    h1 = jnp.maximum(acc, 0.0)                      # (TB, H)

    # ---- Layer 2: Linear(H -> H//2) + ReLU on the MXU, f32 accumulate ----
    b2 = packed_ref[1:2, :h_half]                   # (1, H//2)
    h2 = jnp.dot(h1, w2_ref[...], preferred_element_type=jnp.float32) + b2
    h2 = jnp.maximum(h2, 0.0)                       # (TB, H//2)

    # ---- Layer 3: Linear(H//2 -> 1) + Tanh as VPU multiply + XLU lane reduce ----
    w3_row = packed_ref[2:3, :h_half]               # (1, H//2)
    b3 = packed_ref[3:4, 0:1]                       # (1, 1)
    out = jnp.sum(h2 * w3_row, axis=-1, keepdims=True) + b3   # (TB, 1)
    o_ref[...] = jnp.tanh(out).astype(o_ref.dtype)


def _pick_batch_tile(batch):
    """Largest power-of-two tile (<=512, multiple of 8) that divides the batch."""
    if batch % 8 != 0:
        return batch            # single full block; sublane padding only
    for tb in (512, 256, 128, 64, 32, 16, 8):
        if batch % tb == 0:
            return tb
    return batch


def policy_forward(x, kparams):
    """x: (B, 4) float32; kparams: {'w1': (4,H), 'w2': (H,H//2), 'packed': (4,H)}.

    Returns (B, 1) float32.
    """
    w1, w2, packed = kparams["w1"], kparams["w2"], kparams["packed"]
    B = x.shape[0]
    H = w1.shape[1]
    Hh = w2.shape[1]
    TB = _pick_batch_tile(B)
    grid = (B // TB,)

    return pl.pallas_call(
        _policy_kernel,
        out_shape=jax.ShapeDtypeStruct((B, 1), jnp.float32),
        grid=grid,
        in_specs=[
            pl.BlockSpec((TB, 4), lambda i: (i, 0)),   # x: tiled along batch
            pl.BlockSpec((4, H), lambda i: (0, 0)),    # w1: resident, no re-DMA
            pl.BlockSpec((H, Hh), lambda i: (0, 0)),   # w2: resident, no re-DMA
            pl.BlockSpec((4, H), lambda i: (0, 0)),    # packed biases + w3 col
        ],
        out_specs=pl.BlockSpec((TB, 1), lambda i: (i, 0)),
        compiler_params=pltpu.CompilerParams(
            dimension_semantics=("parallel",)),        # 2x on v7x (2 TCs)
    )(x, w1, w2, packed)


def init_params(key, hidden_features=128):
    """Deterministic init mimicking nn.Linear's uniform(-1/sqrt(fan_in), +).

    Weights stored as (in_features, out_features) so forward is x @ W + b.
    """
    dims = [(4, hidden_features),
            (hidden_features, hidden_features // 2),
            (hidden_features // 2, 1)]
    params = {}
    for i, (fan_in, fan_out) in enumerate(dims, start=1):
        key, kw, kb = jax.random.split(key, 3)
        bound = 1.0 / (fan_in ** 0.5)
        params[f"w{i}"] = jax.random.uniform(
            kw, (fan_in, fan_out), jnp.float32, -bound, bound)
        params[f"b{i}"] = jax.random.uniform(
            kb, (1, fan_out), jnp.float32, -bound, bound)
    return params


def pack_params(params):
    """Collapse the small operands (b1, b2, w3, b3) into a single (4, H) slab."""
    w1, b1 = params["w1"], params["b1"]
    w2, b2 = params["w2"], params["b2"]
    w3, b3 = params["w3"], params["b3"]
    H = w1.shape[1]
    Hh = w2.shape[1]
    packed = jnp.zeros((4, H), jnp.float32)
    packed = packed.at[0, :].set(b1.reshape(H))
    packed = packed.at[1, :Hh].set(b2.reshape(Hh))
    packed = packed.at[2, :Hh].set(w3.reshape(Hh))
    packed = packed.at[3, 0].set(b3.reshape(()))
    return {"w1": w1, "w2": w2, "packed": packed}


def _reference_forward(x, params):
    hi = jax.lax.Precision.HIGHEST
    h1 = jnp.maximum(jnp.dot(x, params["w1"], precision=hi) + params["b1"], 0.0)
    h2 = jnp.maximum(jnp.dot(h1, params["w2"], precision=hi) + params["b2"], 0.0)
    return jnp.tanh(jnp.dot(h2, params["w3"], precision=hi) + params["b3"])


if __name__ == "__main__":
    key = jax.random.PRNGKey(0)
    key, kx = jax.random.split(key)

    batch = 8          # small demo batch (multiple of 8); callers should batch many env states
    hidden = 128       # module default hidden_features
    x = jax.random.normal(kx, (batch, 4), jnp.float32)

    params = init_params(key, hidden_features=hidden)
    kparams = pack_params(params)

    out = jax.block_until_ready(policy_forward(x, kparams))

    ref = _reference_forward(x, params)
    assert out.shape == (batch, 1), out.shape
    assert jnp.allclose(out, ref, atol=1e-5, rtol=1e-5), "mismatch vs reference"

    print("KERNEL_OK")
</pallas_src>

<mosaic_0001>
module attributes {stable_mosaic.version = 11 : i64} {
  func.func @_policy_kernel(%arg0: i32, %arg1: memref<8x4xf32, #tpu.memory_space<vmem>>, %arg2: memref<4x128xf32, #tpu.memory_space<vmem>>, %arg3: memref<128x64xf32, #tpu.memory_space<vmem>>, %arg4: memref<4x128xf32, #tpu.memory_space<vmem>>, %arg5: memref<8x1xf32, #tpu.memory_space<vmem>>) attributes {dimension_semantics = [#tpu.dimension_semantics<parallel>], iteration_bounds = array<i64: 1>, scalar_prefetch = 0 : i64, scratch_operands = 0 : i64, tpu.core_type = #tpu.core_type<tc>, window_params = [{transform_indices = @transform_0, window_bounds = array<i64: 8, 4>}, {pipeline_mode = #tpu.pipeline_mode<synchronous>, transform_indices = @transform_1, window_bounds = array<i64: 4, 128>}, {pipeline_mode = #tpu.pipeline_mode<synchronous>, transform_indices = @transform_2, window_bounds = array<i64: 128, 64>}, {pipeline_mode = #tpu.pipeline_mode<synchronous>, transform_indices = @transform_3, window_bounds = array<i64: 4, 128>}, {transform_indices = @transform_4, window_bounds = array<i64: 8, 1>}]} {
    %c0 = arith.constant 0 : index
    %c0_0 = arith.constant 0 : index
    %0 = vector.load %arg1[%c0, %c0_0] : memref<8x4xf32, #tpu.memory_space<vmem>>, vector<8x4xf32>
    %c0_1 = arith.constant 0 : index
    %c0_2 = arith.constant 0 : index
    %1 = vector.load %arg2[%c0_1, %c0_2] : memref<4x128xf32, #tpu.memory_space<vmem>>, vector<4x128xf32>
    %c0_3 = arith.constant 0 : index
    %c0_4 = arith.constant 0 : index
    %2 = vector.load %arg4[%c0_3, %c0_4] : memref<4x128xf32, #tpu.memory_space<vmem>>, vector<1x128xf32>
    %3 = vector.extract_strided_slice %0 {offsets = [0, 0], sizes = [8, 1], strides = [1, 1]} : vector<8x4xf32> to vector<8x1xf32>
    %4 = vector.extract_strided_slice %1 {offsets = [0, 0], sizes = [1, 128], strides = [1, 1]} : vector<4x128xf32> to vector<1x128xf32>
    %5 = vector.broadcast %3 : vector<8x1xf32> to vector<8x128xf32>
    %6 = vector.broadcast %4 : vector<1x128xf32> to vector<8x128xf32>
    %7 = arith.mulf %5, %6 : vector<8x128xf32>
    %8 = vector.broadcast %2 : vector<1x128xf32> to vector<8x128xf32>
    %9 = arith.addf %8, %7 : vector<8x128xf32>
    %10 = vector.extract_strided_slice %0 {offsets = [0, 1], sizes = [8, 1], strides = [1, 1]} : vector<8x4xf32> to vector<8x1xf32>
    %11 = vector.extract_strided_slice %1 {offsets = [1, 0], sizes = [1, 128], strides = [1, 1]} : vector<4x128xf32> to vector<1x128xf32>
    %12 = vector.broadcast %10 : vector<8x1xf32> to vector<8x128xf32>
    %13 = vector.broadcast %11 : vector<1x128xf32> to vector<8x128xf32>
    %14 = arith.mulf %12, %13 : vector<8x128xf32>
    %15 = arith.addf %9, %14 : vector<8x128xf32>
    %16 = vector.extract_strided_slice %0 {offsets = [0, 2], sizes = [8, 1], strides = [1, 1]} : vector<8x4xf32> to vector<8x1xf32>
    %17 = vector.extract_strided_slice %1 {offsets = [2, 0], sizes = [1, 128], strides = [1, 1]} : vector<4x128xf32> to vector<1x128xf32>
    %18 = vector.broadcast %16 : vector<8x1xf32> to vector<8x128xf32>
    %19 = vector.broadcast %17 : vector<1x128xf32> to vector<8x128xf32>
    %20 = arith.mulf %18, %19 : vector<8x128xf32>
    %21 = arith.addf %15, %20 : vector<8x128xf32>
    %22 = vector.extract_strided_slice %0 {offsets = [0, 3], sizes = [8, 1], strides = [1, 1]} : vector<8x4xf32> to vector<8x1xf32>
    %23 = vector.extract_strided_slice %1 {offsets = [3, 0], sizes = [1, 128], strides = [1, 1]} : vector<4x128xf32> to vector<1x128xf32>
    %24 = vector.broadcast %22 : vector<8x1xf32> to vector<8x128xf32>
    %25 = vector.broadcast %23 : vector<1x128xf32> to vector<8x128xf32>
    %26 = arith.mulf %24, %25 : vector<8x128xf32>
    %27 = arith.addf %21, %26 : vector<8x128xf32>
    %cst = arith.constant 0.000000e+00 : f32
    %28 = vector.broadcast %cst : f32 to vector<8x128xf32>
    %29 = arith.maximumf %27, %28 : vector<8x128xf32>
    %c1 = arith.constant 1 : index
    %c0_5 = arith.constant 0 : index
    %30 = vector.load %arg4[%c1, %c0_5] : memref<4x128xf32, #tpu.memory_space<vmem>>, vector<1x64xf32>
    %c0_6 = arith.constant 0 : index
    %c0_7 = arith.constant 0 : index
    %31 = vector.load %arg3[%c0_6, %c0_7] : memref<128x64xf32, #tpu.memory_space<vmem>>, vector<128x64xf32>
    %cst_8 = arith.constant dense<0.000000e+00> : vector<8x64xf32>
    %32 = tpu.matmul %29, %31, %cst_8 {dimension_numbers = #tpu.dot_dimension_numbers<[1], [0], [0], [1], [0, 0, 1, 1], [], []>} : vector<8x128xf32>, vector<128x64xf32>, vector<8x64xf32> -> vector<8x64xf32>
    %33 = vector.broadcast %30 : vector<1x64xf32> to vector<8x64xf32>
    %34 = arith.addf %32, %33 : vector<8x64xf32>
    %cst_9 = arith.constant 0.000000e+00 : f32
    %35 = vector.broadcast %cst_9 : f32 to vector<8x64xf32>
    %36 = arith.maximumf %34, %35 : vector<8x64xf32>
    %c2 = arith.constant 2 : index
    %c0_10 = arith.constant 0 : index
    %37 = vector.load %arg4[%c2, %c0_10] : memref<4x128xf32, #tpu.memory_space<vmem>>, vector<1x64xf32>
    %c3 = arith.constant 3 : index
    %c0_11 = arith.constant 0 : index
    %38 = vector.load %arg4[%c3, %c0_11] : memref<4x128xf32, #tpu.memory_space<vmem>>, vector<1x1xf32>
    %39 = vector.broadcast %37 : vector<1x64xf32> to vector<8x64xf32>
    %40 = arith.mulf %36, %39 : vector<8x64xf32>
    %cst_12 = arith.constant dense<0.000000e+00> : vector<8xf32>
    %41 = vector.multi_reduction <add>, %40, %cst_12 [1] : vector<8x64xf32> to vector<8xf32>
    %42 = vector.shape_cast %41 : vector<8xf32> to vector<8x1xf32>
    %43 = vector.broadcast %38 : vector<1x1xf32> to vector<8x1xf32>
    %44 = arith.addf %42, %43 : vector<8x1xf32>
    %45 = math.tanh %44 : vector<8x1xf32>
    %c0_13 = arith.constant 0 : index
    %c0_14 = arith.constant 0 : index
    %46 = vector.load %arg5[%c0_13, %c0_14] : memref<8x1xf32, #tpu.memory_space<vmem>>, vector<8x1xf32>
    tpu.vector_store %arg5[%c0_13, %c0_14], %45 {strides = array<i32>} : memref<8x1xf32, #tpu.memory_space<vmem>>, vector<8x1xf32>,
    return
  }
  func.func @transform_0(%arg0: i32) -> (i32, i32) {
    %c0_i32 = arith.constant 0 : i32
    %c0_i32_0 = arith.constant 0 : i32
    return %arg0, %c0_i32 : i32, i32
  }
  func.func @transform_1(%arg0: i32) -> (i32, i32) {
    %c0_i32 = arith.constant 0 : i32
    %c0_i32_0 = arith.constant 0 : i32
    %c0_i32_1 = arith.constant 0 : i32
    return %c0_i32, %c0_i32_0 : i32, i32
  }
  func.func @transform_2(%arg0: i32) -> (i32, i32) {
    %c0_i32 = arith.constant 0 : i32
    %c0_i32_0 = arith.constant 0 : i32
    %c0_i32_1 = arith.constant 0 : i32
    return %c0_i32, %c0_i32_0 : i32, i32
  }
  func.func @transform_3(%arg0: i32) -> (i32, i32) {
    %c0_i32 = arith.constant 0 : i32
    %c0_i32_0 = arith.constant 0 : i32
    %c0_i32_1 = arith.constant 0 : i32
    return %c0_i32, %c0_i32_0 : i32, i32
  }
  func.func @transform_4(%arg0: i32) -> (i32, i32) {
    %c0_i32 = arith.constant 0 : i32
    %c0_i32_0 = arith.constant 0 : i32
    return %arg0, %c0_i32 : i32, i32
  }
}

</mosaic_0001>

<llo_original>
// kernel: tpu_custom_call.1
$region0: #{tpu_custom_call.1}
  #allocation0 [shape = 'u32[]', space=smem, size = 0x4, offset = 0x4, fixed_abs, tag = 'smem constant byte address 0x4 - core index']
  #allocation1 [shape = 'u32[144,128]{1,0:T(1,128)}', space=vmem, size = 0x12000, scoped, tag = 'internal scratch']
  %s0 = inlined_call_operand.vmem [shape: f32[8,4], index: 0, kind: input, shape index: {}]
  %s1 = inlined_call_operand.vmem [shape: f32[4,128], index: 1, kind: input, shape index: {}]
  %s2 = inlined_call_operand.vmem [shape: f32[128,64], index: 2, kind: input, shape index: {}]
  %s3 = inlined_call_operand.vmem [shape: f32[4,128], index: 3, kind: input, shape index: {}]
  %s4 = inlined_call_operand.vmem [shape: f32[8,1], index: 4, kind: output, shape index: {}]
  %s5 = sld [smem:[#allocation0]]
  $region26: #{tpu_custom_call.1} parent=0
    _
  %s7 = ssub.s32 1, %s5
  %s8 = scalar_select 0, %s7, %s5
  // Predicated region
  $region2: #{tpu_custom_call.1} parent=0 // pred_check
    _
  $region3: #{tpu_custom_call.1} parent=0 // pred_check_branch
    %10 = sbr.rel (0) target = $region5
  $region4: #{tpu_custom_call.1} parent=0 // pred_region
    _
  $region5: #{tpu_custom_call.1} parent=0 // pred_fallthru
    _
  // Predicated region
  $region6: #{tpu_custom_call.1} parent=0 // pred_check
    _
  $region7: #{tpu_custom_call.1} parent=0 // pred_check_branch
    %12 = sbr.rel (0) target = $region9
  $region8: #{tpu_custom_call.1} parent=0 // pred_region
    _
  $region9: #{tpu_custom_call.1} parent=0 // pred_fallthru
    _
  // Predicated region
  $region10: #{tpu_custom_call.1} parent=0 // pred_check
    _
  $region11: #{tpu_custom_call.1} parent=0 // pred_check_branch
    %14 = sbr.rel (0) target = $region13
  $region12: #{tpu_custom_call.1} parent=0 // pred_region
    _
  $region13: #{tpu_custom_call.1} parent=0 // pred_fallthru
    _
  // Predicated region
  $region14: #{tpu_custom_call.1} parent=0 // pred_check
    _
  $region15: #{tpu_custom_call.1} parent=0 // pred_check_branch
    %16 = sbr.rel (0) target = $region17
  $region16: #{tpu_custom_call.1} parent=0 // pred_region
    _
  $region17: #{tpu_custom_call.1} parent=0 // pred_fallthru
    _
  %v17 = vld [vmem:[%s0] sm:$0xff]
  %v18 = vld [vmem:[%s1] sm:$0xf]
  %v19 = vld [vmem:[%s3] sm:$0x1]
  %21 = vset.pattern.permute.xlu0 0
  %22 = vperm.xlu0 %21, %v17
  %v23 = vpop.permute.xlu0 %22
  %v25 = vlaneseq
  %v26 = vshrl.u32 %v25, 7
  %v27 = vsub.s32 0, %v26
  %v28 = vrot.slane %v18, %v27
  %v29 = vmul.f32 %v23, %v28
  %v30 = vlaneseq
  %v31 = vshrl.u32 %v30, 7
  %v32 = vsub.s32 0, %v31
  %v33 = vrot.slane %v19, %v32
  %v34 = vadd.f32 %v33, %v29
  %35 = vset.pattern.permute.xlu0 1
  %36 = vperm.xlu0 %35, %v17
  %v37 = vpop.permute.xlu0 %36
  %v39 = vlaneseq
  %v40 = vshrl.u32 %v39, 7
  %v41 = vsub.s32 1, %v40
  %v42 = vrot.slane %v18, %v41
  %v43 = vmul.f32 %v37, %v42
  %v44 = vadd.f32 %v34, %v43
  %45 = vset.pattern.permute.xlu0 2
  %46 = vperm.xlu0 %45, %v17
  %v47 = vpop.permute.xlu0 %46
  %v49 = vlaneseq
  %v50 = vshrl.u32 %v49, 7
  %v51 = vsub.s32 2, %v50
  %v52 = vrot.slane %v18, %v51
  %v53 = vmul.f32 %v47, %v52
  %v54 = vadd.f32 %v44, %v53
  %55 = vset.pattern.permute.xlu0 3
  %56 = vperm.xlu0 %55, %v17
  %v57 = vpop.permute.xlu0 %56
  %v59 = vlaneseq
  %v60 = vshrl.u32 %v59, 7
  %v61 = vsub.s32 3, %v60
  %v62 = vrot.slane %v18, %v61
  %v63 = vmul.f32 %v57, %v62
  %v64 = vadd.f32 %v54, %v63
  %v65 = vmax.f32 %v64, 0.0
  %v66 = vld [vmem:[%s3 + $0x1] sm:$0x1]
  %v67 = vld [vmem:[%s2] sm:$0xff]
  %v68 = vld [vmem:[%s2 + $0x8] sm:$0xff]
  %v69 = vld [vmem:[%s2 + $0x10] sm:$0xff]
  %v70 = vld [vmem:[%s2 + $0x18] sm:$0xff]
  %v71 = vld [vmem:[%s2 + $0x20] sm:$0xff]
  %v72 = vld [vmem:[%s2 + $0x28] sm:$0xff]
  %v73 = vld [vmem:[%s2 + $0x30] sm:$0xff]
  %v74 = vld [vmem:[%s2 + $0x38] sm:$0xff]
  %v75 = vld [vmem:[%s2 + $0x40] sm:$0xff]
  %v76 = vld [vmem:[%s2 + $0x48] sm:$0xff]
  %v77 = vld [vmem:[%s2 + $0x50] sm:$0xff]
  %v78 = vld [vmem:[%s2 + $0x58] sm:$0xff]
  %v79 = vld [vmem:[%s2 + $0x60] sm:$0xff]
  %v80 = vld [vmem:[%s2 + $0x68] sm:$0xff]
  %v81 = vld [vmem:[%s2 + $0x70] sm:$0xff]
  %v82 = vld [vmem:[%s2 + $0x78] sm:$0xff]
  %v83 = vlaneseq
  %v84 = vshrl.u32 %v83, 7
  %v85 = vsub.s32 0, %v84
  %v86 = vrot.slane %v66, %v85
  %87 = vmatprep.subr.mxu0 0.0
  %88 = vmatpush1.msra.mxu0 %v67
  %89 = vmatprep.subr.mxu0 0.0
  %90 = vmatpush1.msra.mxu0 %v68
  %91 = vmatprep.subr.mxu0 0.0
  %92 = vmatpush1.msra.mxu0 %v69
  %93 = vmatprep.subr.mxu0 0.0
  %94 = vmatpush1.msra.mxu0 %v70
  %95 = vmatprep.subr.mxu0 0.0
  %96 = vmatpush1.msra.mxu0 %v71
  %97 = vmatprep.subr.mxu0 0.0
  %98 = vmatpush1.msra.mxu0 %v72
  %99 = vmatprep.subr.mxu0 0.0
  %100 = vmatpush1.msra.mxu0 %v73
  %101 = vmatprep.subr.mxu0 0.0
  %102 = vmatpush1.msra.mxu0 %v74
  %103 = vmatprep.subr.mxu0 0.0
  %104 = vmatpush1.msra.mxu0 %v75
  %105 = vmatprep.subr.mxu0 0.0
  %106 = vmatpush1.msra.mxu0 %v76
  %107 = vmatprep.subr.mxu0 0.0
  %108 = vmatpush1.msra.mxu0 %v77
  %109 = vmatprep.subr.mxu0 0.0
  %110 = vmatpush1.msra.mxu0 %v78
  %111 = vmatprep.subr.mxu0 0.0
  %112 = vmatpush1.msra.mxu0 %v79
  %113 = vmatprep.subr.mxu0 0.0
  %114 = vmatpush1.msra.mxu0 %v80
  %115 = vmatprep.subr.mxu0 0.0
  %116 = vmatpush1.msra.mxu0 %v81
  %117 = vmatprep.subr.mxu0 0.0
  %118 = vmatpush1.msra.mxu0 %v82
  %119 = vmatprep.subr.mxu0 0.0
  %120 = vmatpush1.msra.mxu0 0.0
  %121 = vmatprep.subr.mxu0 0.0
  %122 = vmatpush1.msra.mxu0 0.0
  %123 = vmatprep.subr.mxu0 0.0
  %124 = vmatpush1.msra.mxu0 0.0
  %125 = vmatprep.subr.mxu0 0.0
  %126 = vmatpush1.msra.mxu0 0.0
  %127 = vmatprep.subr.mxu0 0.0
  %128 = vmatpush1.msra.mxu0 0.0
  %129 = vmatprep.subr.mxu0 0.0
  %130 = vmatpush1.msra.mxu0 0.0
  %131 = vmatprep.subr.mxu0 0.0
  %132 = vmatpush1.msra.mxu0 0.0
  %133 = vmatprep.subr.mxu0 0.0
  %134 = vmatpush1.msra.mxu0 0.0
  %135 = vmatprep.subr.mxu0 0.0
  %136 = vmatpush1.msra.mxu0 0.0
  %137 = vmatprep.subr.mxu0 0.0
  %138 = vmatpush1.msra.mxu0 0.0
  %139 = vmatprep.subr.mxu0 0.0
  %140 = vmatpush1.msra.mxu0 0.0
  %141 = vmatprep.subr.mxu0 0.0
  %142 = vmatpush1.msra.mxu0 0.0
  %143 = vmatprep.subr.mxu0 0.0
  %144 = vmatpush1.msra.mxu0 0.0
  %145 = vmatprep.subr.mxu0 0.0
  %146 = vmatpush1.msra.mxu0 0.0
  %147 = vmatprep.subr.mxu0 0.0
  %148 = vmatpush1.msra.mxu0 0.0
  %149 = vmatprep.subr.mxu0 0.0
  %150 = vmatpush1.msra.mxu0 0.0
  %151 = vmatprep.mubr.f32.mxu0 0.0
  %152 = vmatmul.mubr.f32.gmra.mrb[0].mxu0 %v65
  %v153 = vpop.f32.mrb[0].mxu0
  %v154 = vadd.f32 %v86, %v153
  %v155 = vpop.f32.mrb[0].mxu0
  %156 = vdwg.mxu0
  %v157 = vmax.f32 %v154, 0.0
  %v158 = vld [vmem:[%s3 + $0x2] sm:$0x1]
  %v159 = vld [vmem:[%s3 + $0x3] sm:$0x1]
  %v160 = vlaneseq
  %v161 = vshrl.u32 %v160, 7
  %v162 = vsub.s32 0, %v161
  %v163 = vrot.slane %v158, %v162
  %v164 = vmul.f32 %v157, %v163
  %vm165 = vcmask 523264
  %v166 = vsel %vm165, %v164, 0.0
  %167 = vadd.xlane.f32.xlu0 %v166
  %v168 = vpop.xlane.xlu0 %167
  %v169 = vlaneseq
  %v170 = vshrl.u32 %v169, 7
  %v171 = vsub.s32 0, %v170
  %v172 = vrot.slane %v159, %v171
  %v173 = vadd.f32 %v168, %v172
  %v174 = vtanh.pop %v173
  %vm175 = vcmask 7168
  %176 = vst.msk [vmem:[%s4] sm:$0xff] %vm175, %v174
  // Predicated region
  $region18: #{tpu_custom_call.1} parent=0 // pred_check
    _
  $region19: #{tpu_custom_call.1} parent=0 // pred_check_branch
    %178 = sbr.rel (0) target = $region21
  $region20: #{tpu_custom_call.1} parent=0 // pred_region
    _
  $region21: #{tpu_custom_call.1} parent=0 // pred_fallthru
    _
  // Predicated region
  $region22: #{tpu_custom_call.1} parent=0 // pred_check
    _
  $region23: #{tpu_custom_call.1} parent=0 // pred_check_branch
    %180 = sbr.rel (0) target = $region25
  $region24: #{tpu_custom_call.1} parent=0 // pred_region
    _
  $region25: #{tpu_custom_call.1} parent=0 // pred_fallthru
    _

</llo_original>
